<compile_context>
chip_gen: v7x
topology: tpu7x:2x2x1
jax: 0.10.0
libtpu: 0.0.40
codegen_flags: <defaults>
</compile_context>

<pallas_src>
import jax
import jax.numpy as jnp
import numpy as np
from jax.experimental import pallas as pl
from jax.experimental.pallas import tpu as pltpu


_SUBLANES = 8
_LANES = 128

# Indices into the packed SMEM scalar vector.
_HEAD_BIAS, _GAIN, _BIAS = 0, 1, 2

# Budget for the double-buffered input stream (2 buffers * bt * H * itemsize).
# 16 MiB keeps the total footprint comfortably inside every generation's VMEM
# (v7x: 64 MiB physical) while still giving 2 grid steps for B=1024, H=4096
# bf16 — big enough that the ~0.35 us/step overhead is negligible.
_INPUT_STREAM_BUDGET = 16 * 1024 * 1024


def _round_up(x, m):
    return (x + m - 1) // m * m


def _reward_head_kernel(x_ref, w_ref, scalars_ref, out_ref):
    """One batch tile: reward = gain * (x_last @ W^T + b_head) + bias.

    x_ref      : (bt, H) VMEM -- last-token latents for this batch tile
                 (gather fused into the input BlockSpec), native dtype.
    w_ref      : (1, H)  VMEM -- scalar_head weight, lane-dense.
    scalars_ref: (3,)    SMEM -- [head_bias, reward_gain, reward_bias].
    out_ref    : (bt, 1) VMEM, float32.
    """
    _, h = x_ref.shape
    f32 = jnp.float32

    if h % _LANES == 0 and h > _LANES:
        # Chunked accumulation: never materialize a (bt, H) f32 intermediate.
        # Each step loads one (bt, 128) chunk, casts to f32 (VPU), multiplies
        # by the matching weight chunk and adds into a single f32 accumulator,
        # so the live set is bounded by ~2 vreg-columns per batch tile.
        # Kept as a static Python loop: the slices must be static to stay on
        # the free-view path (dynamic lane-dim ref slicing is not reliably
        # lowered), and at <= H/128 <= 64 iterations of ~3 VPU ops each the
        # instruction stream is tiny next to the DMA time (kernel is
        # HBM-bound), so live ranges stay bounded by construction.
        n_chunks = h // _LANES
        acc = (x_ref[:, 0:_LANES].astype(f32) *
               w_ref[:, 0:_LANES].astype(f32))
        for c in range(1, n_chunks):
            lo = c * _LANES
            acc = acc + (x_ref[:, lo:lo + _LANES].astype(f32) *
                         w_ref[:, lo:lo + _LANES].astype(f32))
        row_sum = jnp.sum(acc, axis=-1, keepdims=True)   # one short XLU reduce
    else:
        # Small / non-lane-aligned H: a single load is already tiny.
        x = x_ref[...].astype(f32)
        w = w_ref[...].astype(f32)
        row_sum = jnp.sum(x * w, axis=-1, keepdims=True)

    head_b = scalars_ref[_HEAD_BIAS]
    gain = scalars_ref[_GAIN]
    rbias = scalars_ref[_BIAS]
    out_ref[...] = (gain * (row_sum + head_b) + rbias).astype(out_ref.dtype)


def _pick_batch_tile(batch, hidden, in_itemsize):
    """Pick a batch tile such that
       * the double-buffered input stream stays within _INPUT_STREAM_BUDGET,
       * there are >= 2 grid steps whenever batch > 8 (DMA pipelining on all
         chips; both TensorCores on v7x via the "parallel" batch axis),
       * tiles are sublane-aligned (multiples of 8) with a cdiv grid, so
         awkward batch sizes do not collapse to tiny tiles (tail rows are
         clipped at writeback)."""
    if batch <= _SUBLANES:
        return batch                                  # single full-batch block
    cap_mem = (_INPUT_STREAM_BUDGET // (2 * hidden * in_itemsize))
    cap_mem = max(_SUBLANES, (cap_mem // _SUBLANES) * _SUBLANES)
    cap_par = _round_up(pl.cdiv(batch, 2), _SUBLANES)  # >= 2 tiles, even-ish
    return max(_SUBLANES, min(cap_mem, cap_par))


def _vmem_bytes_estimate(bt, hidden, in_itemsize):
    """Total VMEM footprint: double-buffered input + weight + output blocks
    plus the in-kernel f32 chunk accumulator / temporaries."""
    bt_p = _round_up(bt, _SUBLANES)
    h_p = _round_up(hidden, _LANES)
    inp = 2 * bt_p * h_p * in_itemsize        # double-buffered input blocks
    wgt = 2 * _SUBLANES * h_p * 4             # weight block (padded, 2 bufs)
    out = 2 * bt_p * _LANES * 4               # output block (lane-padded)
    tmp = 4 * bt_p * _LANES * 4               # f32 accumulator + live chunks
    return inp + wgt + out + tmp


def reward_head_pallas(hidden_states, head_w, head_b, reward_gain, reward_bias,
                       *, batch_tile=None):
    """hidden_states: (B, S, H); head_w: (1, H) (or (H,)); head_b/gain/bias
    scalars.  Returns reward of shape (B, 1), float32."""
    batch, seq, hidden = hidden_states.shape
    in_itemsize = jnp.dtype(hidden_states.dtype).itemsize
    head_w = jnp.asarray(head_w).reshape(1, hidden)

    if hidden % _LANES == 0:
        # Fused last-token gather: collapse the two contiguous minor dims
        # (free reshape) and pin the lane-dim block at block index S-1, so
        # only the B*H last-token elements ever travel HBM -> VMEM.
        x2d = hidden_states.reshape(batch, seq * hidden)
        col_block_index = seq - 1
    else:
        # TODO(synk): for hidden sizes that are not 128-aligned (rare for real
        # LMs) fall back to a wrapper-side last-token slice so the kernel's
        # lane-dim block equals the full array dim (keeps Mosaic block rules
        # satisfied at the cost of one extra B*H HBM round trip).
        x2d = hidden_states[:, -1, :]
        col_block_index = 0

    if batch_tile is None:
        bt = _pick_batch_tile(batch, hidden, in_itemsize)
    else:
        bt = int(batch_tile)
        assert bt <= batch, "batch_tile must be <= batch"
        assert bt == batch or bt % _SUBLANES == 0, \
            "batch_tile must be a multiple of 8 (or the full batch)"
    num_tiles = pl.cdiv(batch, bt)

    # Packed scalars: one small SMEM vector instead of three padded refs.
    scalars = jnp.stack([
        jnp.asarray(head_b, jnp.float32).reshape(()),
        jnp.asarray(reward_gain, jnp.float32).reshape(()),
        jnp.asarray(reward_bias, jnp.float32).reshape(()),
    ])

    vmem_limit = min(
        int(1.5 * _vmem_bytes_estimate(bt, hidden, in_itemsize)) + (4 << 20),
        64 << 20)

    cost = pl.CostEstimate(
        flops=2 * batch * hidden,
        transcendentals=0,
        bytes_accessed=(batch * hidden * in_itemsize
                        + hidden * jnp.dtype(head_w.dtype).itemsize
                        + batch * 4 + 16),
    )

    return pl.pallas_call(
        _reward_head_kernel,
        out_shape=jax.ShapeDtypeStruct((batch, 1), jnp.float32),
        grid=(num_tiles,),
        in_specs=[
            # Last-token hidden states only (lane-dim block pinned at S-1 when
            # the gather is fused), native dtype, double-buffered by Pallas.
            pl.BlockSpec((bt, hidden), lambda i: (i, col_block_index)),
            # Head weight, lane-dense, reused by every batch tile.
            pl.BlockSpec((1, hidden), lambda i: (0, 0)),
            # Packed scalars live in SMEM.
            pl.BlockSpec(memory_space=pltpu.MemorySpace.SMEM),
        ],
        out_specs=pl.BlockSpec((bt, 1), lambda i: (i, 0)),
        compiler_params=pltpu.CompilerParams(
            # Batch tiles are independent -> pipeline the DMA stream and shard
            # the axis across both TensorCores on v7x (harmless on v5e/v6e).
            dimension_semantics=("parallel",),
            # Explicit limit: v5e's scoped default is only 16 MiB.
            vmem_limit_bytes=vmem_limit,
        ),
        cost_estimate=cost,
    )(x2d, head_w, scalars)


def forward(hidden_states, params):
    """Mirrors AutoModelForCausalLMWithRewardHead.forward.

    hidden_states stands in for output.hidden_states[-1] of the lm_backbone.
    Returns (hidden_states, reward), analogous to (output, reward).
    """
    # TODO(synk): the lm_backbone (GPT-style transformer) is external glue and
    # is not reimplemented here; the reward head consumes its final hidden
    # states directly.
    reward = reward_head_pallas(
        hidden_states,
        params["scalar_head_w"],
        params["scalar_head_b"],
        params["reward_gain"],
        params["reward_bias"],
    )
    return hidden_states, reward


def _reference(hidden_states, params):
    last = hidden_states[:, -1, :].astype(jnp.float32)
    w = jnp.asarray(params["scalar_head_w"], jnp.float32)
    r = last @ w.T + params["scalar_head_b"]
    return params["reward_gain"] * r + params["reward_bias"]


if __name__ == "__main__":
    key = jax.random.PRNGKey(0)
    k1, k2, k3, k4, k5, k6 = jax.random.split(key, 6)

    # --- Check 1: small shapes consistent with the module (B=2, S=8, H=128),
    #     f32, fused-gather path, single full-batch tile. -------------------
    B, S, H = 2, 8, 128
    hidden_states = jax.random.normal(k1, (B, S, H), dtype=jnp.float32)
    # layer_init(nn.Linear(H, 1), std=1/sqrt(H+1)): weight ~ N(0, std), bias=0.
    scalar_head_w = (1.0 / np.sqrt(H + 1)) * jax.random.normal(
        k2, (1, H), dtype=jnp.float32)
    params = {
        "scalar_head_w": scalar_head_w,
        "scalar_head_b": jnp.float32(0.0),
        "reward_gain": jnp.float32(1.0),
        "reward_bias": jnp.float32(0.0),
    }
    _, reward = forward(hidden_states, params)
    reward = jax.block_until_ready(reward)
    np.testing.assert_allclose(np.asarray(reward),
                               np.asarray(_reference(hidden_states, params)),
                               rtol=1e-5, atol=1e-5)
    assert reward.shape == (B, 1)

    # --- Check 2: non-multiple-of-8 batch (cdiv grid + clipped tail), bf16
    #     input (native-dtype DMA + in-kernel f32 cast), chunked reduction,
    #     >= 2 grid steps. --------------------------------------------------
    B2, S2, H2 = 30, 4, 256
    hidden_states2 = jax.random.normal(k3, (B2, S2, H2),
                                       dtype=jnp.float32).astype(jnp.bfloat16)
    scalar_head_w2 = (1.0 / np.sqrt(H2 + 1)) * jax.random.normal(
        k4, (1, H2), dtype=jnp.float32)
    params2 = {
        "scalar_head_w": scalar_head_w2,
        "scalar_head_b": jnp.float32(0.25),
        "reward_gain": jnp.float32(1.5),
        "reward_bias": jnp.float32(-0.5),
    }
    reward2 = reward_head_pallas(
        hidden_states2, params2["scalar_head_w"], params2["scalar_head_b"],
        params2["reward_gain"], params2["reward_bias"])
    reward2 = jax.block_until_ready(reward2)
    # Chunked accumulation changes the f32 summation order vs. the reference
    # dot; with bf16 inputs allow a slightly loosened tolerance.
    np.testing.assert_allclose(np.asarray(reward2),
                               np.asarray(_reference(hidden_states2, params2)),
                               rtol=1e-4, atol=1e-4)
    assert reward2.shape == (B2, 1)

    # --- Check 3: non-lane-aligned hidden (H=32) -> wrapper-slice fallback. --
    B3, S3, H3 = 2, 8, 32
    hidden_states3 = jax.random.normal(k5, (B3, S3, H3), dtype=jnp.float32)
    scalar_head_w3 = (1.0 / np.sqrt(H3 + 1)) * jax.random.normal(
        k6, (1, H3), dtype=jnp.float32)
    params3 = {
        "scalar_head_w": scalar_head_w3,
        "scalar_head_b": jnp.float32(-0.1),
        "reward_gain": jnp.float32(2.0),
        "reward_bias": jnp.float32(0.3),
    }
    reward3 = reward_head_pallas(
        hidden_states3, params3["scalar_head_w"], params3["scalar_head_b"],
        params3["reward_gain"], params3["reward_bias"])
    reward3 = jax.block_until_ready(reward3)
    np.testing.assert_allclose(np.asarray(reward3),
                               np.asarray(_reference(hidden_states3, params3)),
                               rtol=1e-5, atol=1e-5)
    assert reward3.shape == (B3, 1)

    print("KERNEL_OK")
</pallas_src>

<mosaic_0001>
module attributes {stable_mosaic.version = 11 : i64} {
  func.func @_reward_head_kernel(%arg0: i32, %arg1: memref<2x128xf32, #tpu.memory_space<vmem>>, %arg2: memref<1x128xf32, #tpu.memory_space<vmem>>, %arg3: memref<3xf32, #tpu.memory_space<smem>>, %arg4: memref<2x1xf32, #tpu.memory_space<vmem>>) attributes {dimension_semantics = [#tpu.dimension_semantics<parallel>], iteration_bounds = array<i64: 1>, scalar_prefetch = 0 : i64, scratch_operands = 0 : i64, tpu.core_type = #tpu.core_type<tc>, window_params = [{transform_indices = @transform_0, window_bounds = array<i64: 2, 128>}, {pipeline_mode = #tpu.pipeline_mode<synchronous>, transform_indices = @transform_1, window_bounds = array<i64: 1, 128>}, {transform_indices = @transform_2, window_bounds = array<i64: 3>}, {transform_indices = @transform_3, window_bounds = array<i64: 2, 1>}]} {
    %c0 = arith.constant 0 : index
    %c0_0 = arith.constant 0 : index
    %0 = vector.load %arg1[%c0, %c0_0] : memref<2x128xf32, #tpu.memory_space<vmem>>, vector<2x128xf32>
    %c0_1 = arith.constant 0 : index
    %c0_2 = arith.constant 0 : index
    %1 = vector.load %arg2[%c0_1, %c0_2] : memref<1x128xf32, #tpu.memory_space<vmem>>, vector<1x128xf32>
    %2 = vector.broadcast %1 : vector<1x128xf32> to vector<2x128xf32>
    %3 = arith.mulf %0, %2 : vector<2x128xf32>
    %cst = arith.constant dense<0.000000e+00> : vector<2xf32>
    %4 = vector.multi_reduction <add>, %3, %cst [1] : vector<2x128xf32> to vector<2xf32>
    %5 = vector.shape_cast %4 : vector<2xf32> to vector<2x1xf32>
    %c0_3 = arith.constant 0 : index
    %6 = memref.load %arg3[%c0_3] : memref<3xf32, #tpu.memory_space<smem>>
    %c1 = arith.constant 1 : index
    %7 = memref.load %arg3[%c1] : memref<3xf32, #tpu.memory_space<smem>>
    %c2 = arith.constant 2 : index
    %8 = memref.load %arg3[%c2] : memref<3xf32, #tpu.memory_space<smem>>
    %9 = vector.broadcast %6 : f32 to vector<2x1xf32>
    %10 = arith.addf %5, %9 : vector<2x1xf32>
    %11 = vector.broadcast %7 : f32 to vector<2x1xf32>
    %12 = arith.mulf %11, %10 : vector<2x1xf32>
    %13 = vector.broadcast %8 : f32 to vector<2x1xf32>
    %14 = arith.addf %12, %13 : vector<2x1xf32>
    %c0_4 = arith.constant 0 : index
    %c0_5 = arith.constant 0 : index
    %15 = vector.load %arg4[%c0_4, %c0_5] : memref<2x1xf32, #tpu.memory_space<vmem>>, vector<2x1xf32>
    tpu.vector_store %arg4[%c0_4, %c0_5], %14 {strides = array<i32>} : memref<2x1xf32, #tpu.memory_space<vmem>>, vector<2x1xf32>,
    return
  }
  func.func @transform_0(%arg0: i32) -> (i32, i32) {
    %c7_i32 = arith.constant 7 : i32
    %c0_i32 = arith.constant 0 : i32
    return %arg0, %c7_i32 : i32, i32
  }
  func.func @transform_1(%arg0: i32) -> (i32, i32) {
    %c0_i32 = arith.constant 0 : i32
    %c0_i32_0 = arith.constant 0 : i32
    %c0_i32_1 = arith.constant 0 : i32
    return %c0_i32, %c0_i32_0 : i32, i32
  }
  func.func @transform_2(%arg0: i32) -> i32 {
    %c0_i32 = arith.constant 0 : i32
    %c0_i32_0 = arith.constant 0 : i32
    return %c0_i32 : i32
  }
  func.func @transform_3(%arg0: i32) -> (i32, i32) {
    %c0_i32 = arith.constant 0 : i32
    %c0_i32_0 = arith.constant 0 : i32
    return %arg0, %c0_i32 : i32, i32
  }
}

</mosaic_0001>

<llo_original>
// kernel: tpu_custom_call.1
$region0: #{tpu_custom_call.1}
  #allocation0 [shape = 'u32[]', space=smem, size = 0x4, offset = 0x4, fixed_abs, tag = 'smem constant byte address 0x4 - core index']
  #allocation1 [shape = 'u32[144,128]{1,0:T(1,128)}', space=vmem, size = 0x12000, scoped, tag = 'internal scratch']
  %s0 = inlined_call_operand.hbm [shape: f32[2,1024], index: 0, kind: input, shape index: {}]
  %s1 = inlined_call_operand.vmem [shape: f32[1,128], index: 1, kind: input, shape index: {}]
  %s2 = inlined_call_operand.vmem [shape: f32[3], index: 2, kind: input, shape index: {}]
  %s3 = inlined_call_operand.vmem [shape: f32[2,1], index: 3, kind: output, shape index: {}]
  %s4 = sld [smem:[#allocation0]]
  $region30: #{tpu_custom_call.1} parent=0
    _
  %s6 = ssub.s32 1, %s4
  %s7 = scalar_select 0, %s6, %s4
  $region1: #{tpu_custom_call.1} parent=0
    #allocation2 [shape = 'u8[1024]{0}', space=vmem, size = 0x400, scoped, tag = 'input window, operand 0, single buffered']
    #allocation3 [shape = 's32[1]{0}', space=sflag, size = 0x4, scoped, tag = 'scoped memory for tpu_custom_call.1']
    #allocation4 [shape = 's32[1]{0}', space=sflag, size = 0x4, scoped, tag = 'scoped memory for tpu_custom_call.1']
    #allocation5 [shape = 'u8[512]{0}', space=smem, size = 0x200, scoped, tag = 'input window, operand 2, single buffered']
    %8 = vsyncpa [#allocation3], 0
    %9 = vsyncpa [#allocation4], 0
    // Predicated region
    $region2: #{tpu_custom_call.1} parent=1 // pred_check
      _
    $region3: #{tpu_custom_call.1} parent=1 // pred_check_branch
      %11 = sbr.rel (0) target = $region5
    $region4: #{tpu_custom_call.1} parent=1 // pred_region
      %s13 = ssub.s32 32, 32
      %14 = vsyncadd [#allocation3], %s13
      %s15 = scalar_lea.hbm %s0, 224
      %s17 = sshll.u32 [#allocation2], 4
      %s18 = int_to_ptr.vmem [resolvable:$true] %s17
      %20 = dma.hbm_to_vmem [thread:$0]  %s15, 32, %s18, [#allocation3]
    $region5: #{tpu_custom_call.1} parent=1 // pred_fallthru
      _
    // Predicated region
    $region6: #{tpu_custom_call.1} parent=1 // pred_check
      _
    $region7: #{tpu_custom_call.1} parent=1 // pred_check_branch
      %22 = sbr.rel (0) target = $region9
    $region8: #{tpu_custom_call.1} parent=1 // pred_region
      _
    $region9: #{tpu_custom_call.1} parent=1 // pred_fallthru
      _
    // Predicated region
    $region10: #{tpu_custom_call.1} parent=1 // pred_check
      _
    $region11: #{tpu_custom_call.1} parent=1 // pred_check_branch
      %24 = sbr.rel (0) target = $region13
    $region12: #{tpu_custom_call.1} parent=1 // pred_region
      %s26 = ssub.s32 16, 16
      %27 = vsyncadd [#allocation4], %s26
      %s29 = sshll.u32 %s2, 4
      %s30 = int_to_ptr.vmem [resolvable:$true] %s29
      %32 = dma.vmem_to_smem %s30, 16, [#allocation5], [#allocation4]
    $region13: #{tpu_custom_call.1} parent=1 // pred_fallthru
      _
    // Predicated region
    $region14: #{tpu_custom_call.1} parent=1 // pred_check
      _
    $region15: #{tpu_custom_call.1} parent=1 // pred_check_branch
      %34 = sbr.rel (0) target = $region17
    $region16: #{tpu_custom_call.1} parent=1 // pred_region
      %35 = dma.done [#allocation3], 32
    $region17: #{tpu_custom_call.1} parent=1 // pred_fallthru
      _
    // Predicated region
    $region18: #{tpu_custom_call.1} parent=1 // pred_check
      _
    $region19: #{tpu_custom_call.1} parent=1 // pred_check_branch
      %37 = sbr.rel (0) target = $region21
    $region20: #{tpu_custom_call.1} parent=1 // pred_region
      %38 = dma.done [#allocation4], 16
    $region21: #{tpu_custom_call.1} parent=1 // pred_fallthru
      _
    %39 = sfence
    %v40 = vld [vmem:[#allocation2] sm:$0x3]
    %v41 = vld [vmem:[%s1] sm:$0x1]
    %v43 = vlaneseq
    %v44 = vshrl.u32 %v43, 7
    %v45 = vsub.s32 0, %v44
    %v46 = vrot.slane %v41, %v45
    %v48 = vmul.f32 %v40, %v46
    %vm49 = vcmask 1041408
    %v50 = vsel %vm49, %v48, 0.0
    %51 = vadd.xlane.f32.xlu0 %v50
    %v52 = vpop.xlane.xlu0 %51
    %s53 = sld [smem:[#allocation5]]
    %s54 = sld [smem:[#allocation5 + $0x1]]
    %s55 = sld [smem:[#allocation5 + $0x2]]
    %v56 = vstv %s53
    %v57 = vadd.f32 %v52, %v56
    %v58 = vstv %s54
    %v59 = vmul.f32 %v58, %v57
    %v60 = vstv %s55
    %v61 = vadd.f32 %v59, %v60
    %vm62 = vcmask 1024
    %63 = vst.msk [vmem:[%s3] sm:$0x3] %vm62, %v61
    // Predicated region
    $region22: #{tpu_custom_call.1} parent=1 // pred_check
      _
    $region23: #{tpu_custom_call.1} parent=1 // pred_check_branch
      %65 = sbr.rel (0) target = $region25
    $region24: #{tpu_custom_call.1} parent=1 // pred_region
      _
    $region25: #{tpu_custom_call.1} parent=1 // pred_fallthru
      _
    // Predicated region
    $region26: #{tpu_custom_call.1} parent=1 // pred_check
      _
    $region27: #{tpu_custom_call.1} parent=1 // pred_check_branch
      %67 = sbr.rel (0) target = $region29
    $region28: #{tpu_custom_call.1} parent=1 // pred_region
      _
    $region29: #{tpu_custom_call.1} parent=1 // pred_fallthru
      _
    %68 = vsyncpa [#allocation3], 1
    %69 = vsyncpa [#allocation4], 1

</llo_original>
